<compile_context>
chip_gen: v6e
topology: v6e:2x2x1
jax: 0.10.0
libtpu: 0.0.40
codegen_flags: <defaults>
</compile_context>

<pallas_src>
import numpy as np
import jax
import jax.numpy as jnp
from jax.experimental import pallas as pl
from jax.experimental.pallas import tpu as pltpu

HIDDEN = 128       # hidden_layer_size from the script
INPUT_LEN = 40     # implies 32 * 4 = 128 flatten features
OUT_DIM = 2
OUT_PAD = 128      # lane-dense padded output width


def _silu(z):
    # SiLU = z * sigmoid(z); sigmoid(z) == 0.5*(tanh(z/2)+1)  -> single EUP op.
    return 0.5 * z * (jnp.tanh(0.5 * z) + 1.0)


def nn_forward_kernel(x_ref,
                      w1e_ref, b1e_ref, w1o_ref, b1o_ref,
                      w2_ref, b2_ref,
                      w3_ref, b3_ref,
                      wfc1_ref, bfc1_ref,
                      wh1_ref, bh1_ref,
                      wout_ref, bout_ref,
                      out_ref):
    f32 = jnp.float32
    x = x_ref[...]                                                  # (Bt, 40)
    mmd = w1e_ref.dtype                                             # matmul operand dtype

    # Stage 1: Conv1d(1,8,3,pad=1)+SiLU+MaxPool1d(2), pool folded into two
    # Toeplitz matmuls (even/odd taps): 2 x (Bt,40)@(40,160) + elementwise max.
    xe = x.astype(mmd)
    he = _silu(jnp.dot(xe, w1e_ref[...], preferred_element_type=f32) + b1e_ref[...])
    ho = _silu(jnp.dot(xe, w1o_ref[...], preferred_element_type=f32) + b1o_ref[...])
    h = jnp.maximum(he, ho)                                         # (Bt, 160)

    # Stage 2: Conv1d(8,16,5)+SiLU+MaxPool1d(2): single (Bt,160)@(160,256)
    # (even||odd folded halves concatenated); split on the 128-lane boundary.
    h2 = _silu(jnp.dot(h.astype(mmd), w2_ref[...],
                       preferred_element_type=f32) + b2_ref[...])   # (Bt, 256)
    h = jnp.maximum(h2[:, :128], h2[:, 128:])                       # (Bt, 128)

    # Stage 3: Conv1d(16,32,5)+SiLU: (Bt,128)@(128,128)
    h = _silu(jnp.dot(h.astype(mmd), w3_ref[...],
                      preferred_element_type=f32) + b3_ref[...])    # (Bt, 128)

    # Flatten + Linear(128, HIDDEN)  (flatten permutation folded into wfc1)
    y = jnp.dot(h.astype(mmd), wfc1_ref[...],
                preferred_element_type=f32) + bfc1_ref[...]
    # Linear(HIDDEN, HIDDEN) + SiLU  (N_hidden_layers - 1 == 1 block)
    y = _silu(jnp.dot(y.astype(mmd), wh1_ref[...],
                      preferred_element_type=f32) + bh1_ref[...])
    # Linear(HIDDEN, 2), zero-padded to 128 lanes -> unmasked dense store.
    out_ref[...] = (jnp.dot(y.astype(mmd), wout_ref[...],
                            preferred_element_type=f32) + bout_ref[...])


# ---------------------------------------------------------------------------
# Wrapper-side glue (plain JAX, outside the kernel)
# ---------------------------------------------------------------------------

def _round_up(x, m):
    return ((x + m - 1) // m) * m


def _conv1d_dense(w, l_in, pad):
    """PyTorch Conv1d weight (C_out, C_in, K) -> dense (L_in*C_in, L_out*C_out)
    acting on activations flattened with lane index l*C + c (channel fastest).
    Exact Toeplitz reformulation, zero-padding handled implicitly."""
    c_out, c_in, k = w.shape
    l_out = l_in + 2 * pad - k + 1
    li = jnp.arange(l_in)[:, None]
    lo = jnp.arange(l_out)[None, :]
    tap = li - lo + pad                                   # (L_in, L_out)
    valid = (tap >= 0) & (tap < k)
    w_t = jnp.transpose(w, (2, 1, 0))                     # (K, C_in, C_out)
    dense = w_t[jnp.clip(tap, 0, k - 1)]                  # (L_in, L_out, C_in, C_out)
    dense = dense * valid[:, :, None, None].astype(w.dtype)
    dense = jnp.transpose(dense, (0, 2, 1, 3))            # (L_in, C_in, L_out, C_out)
    return dense.reshape(l_in * c_in, l_out * c_out)


def _pool_select(l_in, c):
    """MaxPool1d(2) as two 0/1 column-selection matrices on flat (l*C + c)
    features.  Only used wrapper-side to fold the pool into conv weights."""
    l_out = l_in // 2
    li = jnp.arange(l_in)[:, None]
    lo = jnp.arange(l_out)[None, :]
    eye_c = jnp.eye(c, dtype=jnp.float32)
    se = jnp.kron((li == 2 * lo).astype(jnp.float32), eye_c)   # (L_in*C, L_out*C)
    so = jnp.kron((li == 2 * lo + 1).astype(jnp.float32), eye_c)
    return se, so


def init_params(key):
    ks = jax.random.split(key, 12)

    def w(k, shape, scale=0.1):
        return scale * jax.random.normal(k, shape, jnp.float32)

    # PyTorch-shaped parameters (Conv1d: (Cout, Cin, K); Linear: (out, in)).
    return dict(
        w1=w(ks[0], (8, 1, 3)),       b1=w(ks[1], (8,)),
        w2=w(ks[2], (16, 8, 5)),      b2=w(ks[3], (16,)),
        w3=w(ks[4], (32, 16, 5)),     b3=w(ks[5], (32,)),
        wfc1=w(ks[6], (HIDDEN, 128)), bfc1=w(ks[7], (HIDDEN,)),
        wh1=w(ks[8], (HIDDEN, HIDDEN)), bh1=w(ks[9], (HIDDEN,)),
        wout=w(ks[10], (2, HIDDEN)),  bout=w(ks[11], (2,)),
    )


def _choose_tile(B, batch_tile):
    b_req = _round_up(B, 8)
    bt = min(batch_tile, b_req)
    # If the whole batch would fit in a single tile, split it into >= 2
    # "parallel" grid steps so v7x can shard across both TensorCores.
    if bt == b_req and b_req >= 16:
        bt = _round_up((b_req + 1) // 2, 8)
    b_pad = _round_up(B, bt)
    return bt, b_pad


def nn_forward(x, params, batch_tile=1024, matmul_dtype=jnp.float32):
    """x: (B, 1, INPUT_LEN) float32, NCL like PyTorch.  Returns (B, 2).

    matmul_dtype=jnp.bfloat16 feeds the MXU bf16 operands (f32 accumulation)
    for ~3-6x MXU throughput on v6e/v7x; default f32 keeps the exact match.
    """
    B, cin, L = x.shape
    assert cin == 1 and L == INPUT_LEN
    f32 = jnp.float32

    # ---- batch tiling (pad so all blocks are full) --------------------------
    bt, b_pad = _choose_tile(B, batch_tile)
    x2 = jnp.pad(x.reshape(B, INPUT_LEN), ((0, b_pad - B), (0, 0)))  # (B_pad, 40)

    # ---- dense GEMM-form weights, maxpool folded in -------------------------
    # Stage 1: Conv1d(1,8,3,pad=1); pool on 40 spatial x 8 ch -> 20 x 8.
    w1d = _conv1d_dense(params["w1"], INPUT_LEN, pad=1)      # (40, 320)
    b1f = jnp.tile(params["b1"], INPUT_LEN)                  # (320,)  l*8+c
    s1e, s1o = _pool_select(INPUT_LEN, 8)                    # (320, 160)
    w1e, w1o = w1d @ s1e, w1d @ s1o                          # (40, 160) each
    b1e, b1o = (b1f @ s1e)[None, :], (b1f @ s1o)[None, :]    # (1, 160) each

    # Stage 2: Conv1d(8,16,5); pool on 16 spatial x 16 ch -> 8 x 16.
    w2d = _conv1d_dense(params["w2"], 20, pad=0)             # (160, 256)
    b2f = jnp.tile(params["b2"], 16)                         # (256,)
    s2e, s2o = _pool_select(16, 16)                          # (256, 128)
    w2cat = jnp.concatenate([w2d @ s2e, w2d @ s2o], axis=1)  # (160, 256)
    b2cat = jnp.concatenate([b2f @ s2e, b2f @ s2o])[None, :]  # (1, 256)

    # Stage 3: Conv1d(16,32,5) on 8 spatial x 16 ch -> 4 x 32.
    w3d = _conv1d_dense(params["w3"], 8, pad=0)              # (128, 128)
    b3f = jnp.tile(params["b3"], 4)[None, :]                 # (1, 128)

    # PyTorch flatten index = c*4 + l; kernel lane index = l*32 + c.
    wfc1 = jnp.transpose(params["wfc1"].reshape(HIDDEN, 32, 4),
                         (2, 1, 0)).reshape(128, HIDDEN)     # (128, HIDDEN)
    bfc1 = params["bfc1"][None, :]
    wh1 = params["wh1"].T                                    # (HIDDEN, HIDDEN)
    bh1 = params["bh1"][None, :]
    wout = jnp.pad(params["wout"].T, ((0, 0), (0, OUT_PAD - OUT_DIM)))  # (HIDDEN,128)
    bout = jnp.pad(params["bout"], (0, OUT_PAD - OUT_DIM))[None, :]     # (1, 128)

    mm = lambda w: w.astype(matmul_dtype)                    # MXU operand dtype
    weights = (mm(w1e), b1e, mm(w1o), b1o,
               mm(w2cat), b2cat,
               mm(w3d), b3f,
               mm(wfc1), bfc1, mm(wh1), bh1, mm(wout), bout)

    def full(a):
        nd = a.ndim
        return pl.BlockSpec(a.shape, lambda b, _nd=nd: (0,) * _nd)

    out = pl.pallas_call(
        nn_forward_kernel,
        out_shape=jax.ShapeDtypeStruct((b_pad, OUT_PAD), f32),
        grid=(b_pad // bt,),
        in_specs=[pl.BlockSpec((bt, INPUT_LEN), lambda b: (b, 0))]
                 + [full(w) for w in weights],
        out_specs=pl.BlockSpec((bt, OUT_PAD), lambda b: (b, 0)),
        compiler_params=pltpu.CompilerParams(
            dimension_semantics=("parallel",),
            vmem_limit_bytes=32 * 1024 * 1024),
    )(x2, *weights)

    return out[:B, :OUT_DIM]                                 # (B, 2)


def nn_forward_reference(x, params):
    """Pure-JAX (XLA) reference with PyTorch NCL semantics."""
    silu = lambda z: z * jax.nn.sigmoid(z)

    def conv1d(h, w, b, pad):
        out = jax.lax.conv_general_dilated(
            h, w, window_strides=(1,), padding=[(pad, pad)],
            dimension_numbers=("NCH", "OIH", "NCH"))
        return out + b[None, :, None]

    def maxpool2(h):
        bsz, c, l = h.shape
        return jnp.max(h.reshape(bsz, c, l // 2, 2), axis=-1)

    h = maxpool2(silu(conv1d(x, params["w1"], params["b1"], 1)))
    h = maxpool2(silu(conv1d(h, params["w2"], params["b2"], 0)))
    h = silu(conv1d(h, params["w3"], params["b3"], 0))
    flat = h.reshape(h.shape[0], -1)                        # (B, 128), c*4+l order
    y = flat @ params["wfc1"].T + params["bfc1"]
    y = silu(y @ params["wh1"].T + params["bh1"])
    return y @ params["wout"].T + params["bout"]


if __name__ == "__main__":
    key = jax.random.PRNGKey(0)
    kx, kp = jax.random.split(key)
    params = init_params(kp)

    # Small batch (single grid step).
    x_small = jax.random.normal(kx, (2, 1, INPUT_LEN), jnp.float32)  # NCL
    out_small = jax.block_until_ready(nn_forward(x_small, params))
    ref_small = nn_forward_reference(x_small, params)
    np.testing.assert_allclose(np.asarray(out_small), np.asarray(ref_small),
                               rtol=1e-4, atol=1e-4)

    # Larger batch exercising padding + >=2 parallel grid steps.
    x_big = jax.random.normal(kx, (100, 1, INPUT_LEN), jnp.float32)
    out_big = jax.block_until_ready(nn_forward(x_big, params))
    ref_big = nn_forward_reference(x_big, params)
    np.testing.assert_allclose(np.asarray(out_big), np.asarray(ref_big),
                               rtol=1e-4, atol=1e-4)

    print("KERNEL_OK")
</pallas_src>

<mosaic_0001>
module attributes {stable_mosaic.version = 11 : i64} {
  func.func @nn_forward_kernel(%arg0: i32, %arg1: memref<8x40xf32, #tpu.memory_space<vmem>>, %arg2: memref<40x160xf32, #tpu.memory_space<vmem>>, %arg3: memref<1x160xf32, #tpu.memory_space<vmem>>, %arg4: memref<40x160xf32, #tpu.memory_space<vmem>>, %arg5: memref<1x160xf32, #tpu.memory_space<vmem>>, %arg6: memref<160x256xf32, #tpu.memory_space<vmem>>, %arg7: memref<1x256xf32, #tpu.memory_space<vmem>>, %arg8: memref<128x128xf32, #tpu.memory_space<vmem>>, %arg9: memref<1x128xf32, #tpu.memory_space<vmem>>, %arg10: memref<128x128xf32, #tpu.memory_space<vmem>>, %arg11: memref<1x128xf32, #tpu.memory_space<vmem>>, %arg12: memref<128x128xf32, #tpu.memory_space<vmem>>, %arg13: memref<1x128xf32, #tpu.memory_space<vmem>>, %arg14: memref<128x128xf32, #tpu.memory_space<vmem>>, %arg15: memref<1x128xf32, #tpu.memory_space<vmem>>, %arg16: memref<8x128xf32, #tpu.memory_space<vmem>>) attributes {dimension_semantics = [#tpu.dimension_semantics<parallel>], iteration_bounds = array<i64: 1>, scalar_prefetch = 0 : i64, scratch_operands = 0 : i64, tpu.core_type = #tpu.core_type<tc>, window_params = [{transform_indices = @transform_0, window_bounds = array<i64: 8, 40>}, {pipeline_mode = #tpu.pipeline_mode<synchronous>, transform_indices = @transform_1, window_bounds = array<i64: 40, 160>}, {pipeline_mode = #tpu.pipeline_mode<synchronous>, transform_indices = @transform_2, window_bounds = array<i64: 1, 160>}, {pipeline_mode = #tpu.pipeline_mode<synchronous>, transform_indices = @transform_3, window_bounds = array<i64: 40, 160>}, {pipeline_mode = #tpu.pipeline_mode<synchronous>, transform_indices = @transform_4, window_bounds = array<i64: 1, 160>}, {pipeline_mode = #tpu.pipeline_mode<synchronous>, transform_indices = @transform_5, window_bounds = array<i64: 160, 256>}, {pipeline_mode = #tpu.pipeline_mode<synchronous>, transform_indices = @transform_6, window_bounds = array<i64: 1, 256>}, {pipeline_mode = #tpu.pipeline_mode<synchronous>, transform_indices = @transform_7, window_bounds = array<i64: 128, 128>}, {pipeline_mode = #tpu.pipeline_mode<synchronous>, transform_indices = @transform_8, window_bounds = array<i64: 1, 128>}, {pipeline_mode = #tpu.pipeline_mode<synchronous>, transform_indices = @transform_9, window_bounds = array<i64: 128, 128>}, {pipeline_mode = #tpu.pipeline_mode<synchronous>, transform_indices = @transform_10, window_bounds = array<i64: 1, 128>}, {pipeline_mode = #tpu.pipeline_mode<synchronous>, transform_indices = @transform_11, window_bounds = array<i64: 128, 128>}, {pipeline_mode = #tpu.pipeline_mode<synchronous>, transform_indices = @transform_12, window_bounds = array<i64: 1, 128>}, {pipeline_mode = #tpu.pipeline_mode<synchronous>, transform_indices = @transform_13, window_bounds = array<i64: 128, 128>}, {pipeline_mode = #tpu.pipeline_mode<synchronous>, transform_indices = @transform_14, window_bounds = array<i64: 1, 128>}, {transform_indices = @transform_15, window_bounds = array<i64: 8, 128>}]} {
    %c0 = arith.constant 0 : index
    %c0_0 = arith.constant 0 : index
    %0 = vector.load %arg1[%c0, %c0_0] : memref<8x40xf32, #tpu.memory_space<vmem>>, vector<8x40xf32>
    %c0_1 = arith.constant 0 : index
    %c0_2 = arith.constant 0 : index
    %1 = vector.load %arg2[%c0_1, %c0_2] : memref<40x160xf32, #tpu.memory_space<vmem>>, vector<40x160xf32>
    %cst = arith.constant dense<0.000000e+00> : vector<8x160xf32>
    %2 = tpu.matmul %0, %1, %cst {dimension_numbers = #tpu.dot_dimension_numbers<[1], [0], [0], [1], [0, 0, 1, 1], [], []>} : vector<8x40xf32>, vector<40x160xf32>, vector<8x160xf32> -> vector<8x160xf32>
    %c0_3 = arith.constant 0 : index
    %c0_4 = arith.constant 0 : index
    %3 = vector.load %arg3[%c0_3, %c0_4] : memref<1x160xf32, #tpu.memory_space<vmem>>, vector<1x160xf32>
    %4 = vector.broadcast %3 : vector<1x160xf32> to vector<8x160xf32>
    %5 = arith.addf %2, %4 : vector<8x160xf32>
    %cst_5 = arith.constant 5.000000e-01 : f32
    %6 = vector.broadcast %cst_5 : f32 to vector<8x160xf32>
    %7 = arith.mulf %6, %5 : vector<8x160xf32>
    %cst_6 = arith.constant 5.000000e-01 : f32
    %8 = vector.broadcast %cst_6 : f32 to vector<8x160xf32>
    %9 = arith.mulf %8, %5 : vector<8x160xf32>
    %10 = math.tanh %9 : vector<8x160xf32>
    %cst_7 = arith.constant 1.000000e+00 : f32
    %11 = vector.broadcast %cst_7 : f32 to vector<8x160xf32>
    %12 = arith.addf %10, %11 : vector<8x160xf32>
    %13 = arith.mulf %7, %12 : vector<8x160xf32>
    %c0_8 = arith.constant 0 : index
    %c0_9 = arith.constant 0 : index
    %14 = vector.load %arg4[%c0_8, %c0_9] : memref<40x160xf32, #tpu.memory_space<vmem>>, vector<40x160xf32>
    %cst_10 = arith.constant dense<0.000000e+00> : vector<8x160xf32>
    %15 = tpu.matmul %0, %14, %cst_10 {dimension_numbers = #tpu.dot_dimension_numbers<[1], [0], [0], [1], [0, 0, 1, 1], [], []>} : vector<8x40xf32>, vector<40x160xf32>, vector<8x160xf32> -> vector<8x160xf32>
    %c0_11 = arith.constant 0 : index
    %c0_12 = arith.constant 0 : index
    %16 = vector.load %arg5[%c0_11, %c0_12] : memref<1x160xf32, #tpu.memory_space<vmem>>, vector<1x160xf32>
    %17 = vector.broadcast %16 : vector<1x160xf32> to vector<8x160xf32>
    %18 = arith.addf %15, %17 : vector<8x160xf32>
    %cst_13 = arith.constant 5.000000e-01 : f32
    %19 = vector.broadcast %cst_13 : f32 to vector<8x160xf32>
    %20 = arith.mulf %19, %18 : vector<8x160xf32>
    %cst_14 = arith.constant 5.000000e-01 : f32
    %21 = vector.broadcast %cst_14 : f32 to vector<8x160xf32>
    %22 = arith.mulf %21, %18 : vector<8x160xf32>
    %23 = math.tanh %22 : vector<8x160xf32>
    %cst_15 = arith.constant 1.000000e+00 : f32
    %24 = vector.broadcast %cst_15 : f32 to vector<8x160xf32>
    %25 = arith.addf %23, %24 : vector<8x160xf32>
    %26 = arith.mulf %20, %25 : vector<8x160xf32>
    %27 = arith.maximumf %13, %26 : vector<8x160xf32>
    %c0_16 = arith.constant 0 : index
    %c0_17 = arith.constant 0 : index
    %28 = vector.load %arg6[%c0_16, %c0_17] : memref<160x256xf32, #tpu.memory_space<vmem>>, vector<160x256xf32>
    %cst_18 = arith.constant dense<0.000000e+00> : vector<8x256xf32>
    %29 = tpu.matmul %27, %28, %cst_18 {dimension_numbers = #tpu.dot_dimension_numbers<[1], [0], [0], [1], [0, 0, 1, 1], [], []>} : vector<8x160xf32>, vector<160x256xf32>, vector<8x256xf32> -> vector<8x256xf32>
    %c0_19 = arith.constant 0 : index
    %c0_20 = arith.constant 0 : index
    %30 = vector.load %arg7[%c0_19, %c0_20] : memref<1x256xf32, #tpu.memory_space<vmem>>, vector<1x256xf32>
    %31 = vector.broadcast %30 : vector<1x256xf32> to vector<8x256xf32>
    %32 = arith.addf %29, %31 : vector<8x256xf32>
    %cst_21 = arith.constant 5.000000e-01 : f32
    %33 = vector.broadcast %cst_21 : f32 to vector<8x256xf32>
    %34 = arith.mulf %33, %32 : vector<8x256xf32>
    %cst_22 = arith.constant 5.000000e-01 : f32
    %35 = vector.broadcast %cst_22 : f32 to vector<8x256xf32>
    %36 = arith.mulf %35, %32 : vector<8x256xf32>
    %37 = math.tanh %36 : vector<8x256xf32>
    %cst_23 = arith.constant 1.000000e+00 : f32
    %38 = vector.broadcast %cst_23 : f32 to vector<8x256xf32>
    %39 = arith.addf %37, %38 : vector<8x256xf32>
    %40 = arith.mulf %34, %39 : vector<8x256xf32>
    %41 = vector.extract_strided_slice %40 {offsets = [0, 0], sizes = [8, 128], strides = [1, 1]} : vector<8x256xf32> to vector<8x128xf32>
    %42 = vector.extract_strided_slice %40 {offsets = [0, 128], sizes = [8, 128], strides = [1, 1]} : vector<8x256xf32> to vector<8x128xf32>
    %43 = arith.maximumf %41, %42 : vector<8x128xf32>
    %c0_24 = arith.constant 0 : index
    %c0_25 = arith.constant 0 : index
    %44 = vector.load %arg8[%c0_24, %c0_25] : memref<128x128xf32, #tpu.memory_space<vmem>>, vector<128x128xf32>
    %cst_26 = arith.constant dense<0.000000e+00> : vector<8x128xf32>
    %45 = tpu.matmul %43, %44, %cst_26 {dimension_numbers = #tpu.dot_dimension_numbers<[1], [0], [0], [1], [0, 0, 1, 1], [], []>} : vector<8x128xf32>, vector<128x128xf32>, vector<8x128xf32> -> vector<8x128xf32>
    %c0_27 = arith.constant 0 : index
    %c0_28 = arith.constant 0 : index
    %46 = vector.load %arg9[%c0_27, %c0_28] : memref<1x128xf32, #tpu.memory_space<vmem>>, vector<1x128xf32>
    %47 = vector.broadcast %46 : vector<1x128xf32> to vector<8x128xf32>
    %48 = arith.addf %45, %47 : vector<8x128xf32>
    %cst_29 = arith.constant 5.000000e-01 : f32
    %49 = vector.broadcast %cst_29 : f32 to vector<8x128xf32>
    %50 = arith.mulf %49, %48 : vector<8x128xf32>
    %cst_30 = arith.constant 5.000000e-01 : f32
    %51 = vector.broadcast %cst_30 : f32 to vector<8x128xf32>
    %52 = arith.mulf %51, %48 : vector<8x128xf32>
    %53 = math.tanh %52 : vector<8x128xf32>
    %cst_31 = arith.constant 1.000000e+00 : f32
    %54 = vector.broadcast %cst_31 : f32 to vector<8x128xf32>
    %55 = arith.addf %53, %54 : vector<8x128xf32>
    %56 = arith.mulf %50, %55 : vector<8x128xf32>
    %c0_32 = arith.constant 0 : index
    %c0_33 = arith.constant 0 : index
    %57 = vector.load %arg10[%c0_32, %c0_33] : memref<128x128xf32, #tpu.memory_space<vmem>>, vector<128x128xf32>
    %cst_34 = arith.constant dense<0.000000e+00> : vector<8x128xf32>
    %58 = tpu.matmul %56, %57, %cst_34 {dimension_numbers = #tpu.dot_dimension_numbers<[1], [0], [0], [1], [0, 0, 1, 1], [], []>} : vector<8x128xf32>, vector<128x128xf32>, vector<8x128xf32> -> vector<8x128xf32>
    %c0_35 = arith.constant 0 : index
    %c0_36 = arith.constant 0 : index
    %59 = vector.load %arg11[%c0_35, %c0_36] : memref<1x128xf32, #tpu.memory_space<vmem>>, vector<1x128xf32>
    %60 = vector.broadcast %59 : vector<1x128xf32> to vector<8x128xf32>
    %61 = arith.addf %58, %60 : vector<8x128xf32>
    %c0_37 = arith.constant 0 : index
    %c0_38 = arith.constant 0 : index
    %62 = vector.load %arg12[%c0_37, %c0_38] : memref<128x128xf32, #tpu.memory_space<vmem>>, vector<128x128xf32>
    %cst_39 = arith.constant dense<0.000000e+00> : vector<8x128xf32>
    %63 = tpu.matmul %61, %62, %cst_39 {dimension_numbers = #tpu.dot_dimension_numbers<[1], [0], [0], [1], [0, 0, 1, 1], [], []>} : vector<8x128xf32>, vector<128x128xf32>, vector<8x128xf32> -> vector<8x128xf32>
    %c0_40 = arith.constant 0 : index
    %c0_41 = arith.constant 0 : index
    %64 = vector.load %arg13[%c0_40, %c0_41] : memref<1x128xf32, #tpu.memory_space<vmem>>, vector<1x128xf32>
    %65 = vector.broadcast %64 : vector<1x128xf32> to vector<8x128xf32>
    %66 = arith.addf %63, %65 : vector<8x128xf32>
    %cst_42 = arith.constant 5.000000e-01 : f32
    %67 = vector.broadcast %cst_42 : f32 to vector<8x128xf32>
    %68 = arith.mulf %67, %66 : vector<8x128xf32>
    %cst_43 = arith.constant 5.000000e-01 : f32
    %69 = vector.broadcast %cst_43 : f32 to vector<8x128xf32>
    %70 = arith.mulf %69, %66 : vector<8x128xf32>
    %71 = math.tanh %70 : vector<8x128xf32>
    %cst_44 = arith.constant 1.000000e+00 : f32
    %72 = vector.broadcast %cst_44 : f32 to vector<8x128xf32>
    %73 = arith.addf %71, %72 : vector<8x128xf32>
    %74 = arith.mulf %68, %73 : vector<8x128xf32>
    %c0_45 = arith.constant 0 : index
    %c0_46 = arith.constant 0 : index
    %75 = vector.load %arg14[%c0_45, %c0_46] : memref<128x128xf32, #tpu.memory_space<vmem>>, vector<128x128xf32>
    %cst_47 = arith.constant dense<0.000000e+00> : vector<8x128xf32>
    %76 = tpu.matmul %74, %75, %cst_47 {dimension_numbers = #tpu.dot_dimension_numbers<[1], [0], [0], [1], [0, 0, 1, 1], [], []>} : vector<8x128xf32>, vector<128x128xf32>, vector<8x128xf32> -> vector<8x128xf32>
    %c0_48 = arith.constant 0 : index
    %c0_49 = arith.constant 0 : index
    %77 = vector.load %arg15[%c0_48, %c0_49] : memref<1x128xf32, #tpu.memory_space<vmem>>, vector<1x128xf32>
    %78 = vector.broadcast %77 : vector<1x128xf32> to vector<8x128xf32>
    %79 = arith.addf %76, %78 : vector<8x128xf32>
    %c0_50 = arith.constant 0 : index
    %c0_51 = arith.constant 0 : index
    %80 = vector.load %arg16[%c0_50, %c0_51] : memref<8x128xf32, #tpu.memory_space<vmem>>, vector<8x128xf32>
    tpu.vector_store %arg16[%c0_50, %c0_51], %79 {strides = array<i32>} : memref<8x128xf32, #tpu.memory_space<vmem>>, vector<8x128xf32>,
    return
  }
  func.func @transform_0(%arg0: i32) -> (i32, i32) {
    %c0_i32 = arith.constant 0 : i32
    %c0_i32_0 = arith.constant 0 : i32
    return %arg0, %c0_i32 : i32, i32
  }
  func.func @transform_1(%arg0: i32) -> (i32, i32) {
    %c0_i32 = arith.constant 0 : i32
    %c0_i32_0 = arith.constant 0 : i32
    %c0_i32_1 = arith.constant 0 : i32
    return %c0_i32, %c0_i32_0 : i32, i32
  }
  func.func @transform_2(%arg0: i32) -> (i32, i32) {
    %c0_i32 = arith.constant 0 : i32
    %c0_i32_0 = arith.constant 0 : i32
    %c0_i32_1 = arith.constant 0 : i32
    return %c0_i32, %c0_i32_0 : i32, i32
  }
  func.func @transform_3(%arg0: i32) -> (i32, i32) {
    %c0_i32 = arith.constant 0 : i32
    %c0_i32_0 = arith.constant 0 : i32
    %c0_i32_1 = arith.constant 0 : i32
    return %c0_i32, %c0_i32_0 : i32, i32
  }
  func.func @transform_4(%arg0: i32) -> (i32, i32) {
    %c0_i32 = arith.constant 0 : i32
    %c0_i32_0 = arith.constant 0 : i32
    %c0_i32_1 = arith.constant 0 : i32
    return %c0_i32, %c0_i32_0 : i32, i32
  }
  func.func @transform_5(%arg0: i32) -> (i32, i32) {
    %c0_i32 = arith.constant 0 : i32
    %c0_i32_0 = arith.constant 0 : i32
    %c0_i32_1 = arith.constant 0 : i32
    return %c0_i32, %c0_i32_0 : i32, i32
  }
  func.func @transform_6(%arg0: i32) -> (i32, i32) {
    %c0_i32 = arith.constant 0 : i32
    %c0_i32_0 = arith.constant 0 : i32
    %c0_i32_1 = arith.constant 0 : i32
    return %c0_i32, %c0_i32_0 : i32, i32
  }
  func.func @transform_7(%arg0: i32) -> (i32, i32) {
    %c0_i32 = arith.constant 0 : i32
    %c0_i32_0 = arith.constant 0 : i32
    %c0_i32_1 = arith.constant 0 : i32
    return %c0_i32, %c0_i32_0 : i32, i32
  }
  func.func @transform_8(%arg0: i32) -> (i32, i32) {
    %c0_i32 = arith.constant 0 : i32
    %c0_i32_0 = arith.constant 0 : i32
    %c0_i32_1 = arith.constant 0 : i32
    return %c0_i32, %c0_i32_0 : i32, i32
  }
  func.func @transform_9(%arg0: i32) -> (i32, i32) {
    %c0_i32 = arith.constant 0 : i32
    %c0_i32_0 = arith.constant 0 : i32
    %c0_i32_1 = arith.constant 0 : i32
    return %c0_i32, %c0_i32_0 : i32, i32
  }
  func.func @transform_10(%arg0: i32) -> (i32, i32) {
    %c0_i32 = arith.constant 0 : i32
    %c0_i32_0 = arith.constant 0 : i32
    %c0_i32_1 = arith.constant 0 : i32
    return %c0_i32, %c0_i32_0 : i32, i32
  }
  func.func @transform_11(%arg0: i32) -> (i32, i32) {
    %c0_i32 = arith.constant 0 : i32
    %c0_i32_0 = arith.constant 0 : i32
    %c0_i32_1 = arith.constant 0 : i32
    return %c0_i32, %c0_i32_0 : i32, i32
  }
  func.func @transform_12(%arg0: i32) -> (i32, i32) {
    %c0_i32 = arith.constant 0 : i32
    %c0_i32_0 = arith.constant 0 : i32
    %c0_i32_1 = arith.constant 0 : i32
    return %c0_i32, %c0_i32_0 : i32, i32
  }
  func.func @transform_13(%arg0: i32) -> (i32, i32) {
    %c0_i32 = arith.constant 0 : i32
    %c0_i32_0 = arith.constant 0 : i32
    %c0_i32_1 = arith.constant 0 : i32
    return %c0_i32, %c0_i32_0 : i32, i32
  }
  func.func @transform_14(%arg0: i32) -> (i32, i32) {
    %c0_i32 = arith.constant 0 : i32
    %c0_i32_0 = arith.constant 0 : i32
    %c0_i32_1 = arith.constant 0 : i32
    return %c0_i32, %c0_i32_0 : i32, i32
  }
  func.func @transform_15(%arg0: i32) -> (i32, i32) {
    %c0_i32 = arith.constant 0 : i32
    %c0_i32_0 = arith.constant 0 : i32
    return %arg0, %c0_i32 : i32, i32
  }
}

</mosaic_0001>

<llo_original>
// kernel: tpu_custom_call.1
$region0: #{tpu_custom_call.1}
  #allocation0 [shape = 'u32[]', space=smem, size = 0x4, offset = 0x4, fixed_abs, tag = 'smem constant byte address 0x4 - core index']
  #allocation1 [shape = 'u32[144,128]{1,0:T(1,128)}', space=vmem, size = 0x12000, scoped, tag = 'internal scratch']
  %s0 = inlined_call_operand.hbm [shape: f32[8,40], index: 0, kind: input, shape index: {}]
  %s1 = inlined_call_operand.hbm [shape: f32[40,160], index: 1, kind: input, shape index: {}]
  %s2 = inlined_call_operand.vmem [shape: f32[1,160], index: 2, kind: input, shape index: {}]
  %s3 = inlined_call_operand.hbm [shape: f32[40,160], index: 3, kind: input, shape index: {}]
  %s4 = inlined_call_operand.vmem [shape: f32[1,160], index: 4, kind: input, shape index: {}]
  %s5 = inlined_call_operand.hbm [shape: f32[160,256], index: 5, kind: input, shape index: {}]
  %s6 = inlined_call_operand.vmem [shape: f32[1,256], index: 6, kind: input, shape index: {}]
  %s7 = inlined_call_operand.hbm [shape: f32[128,128], index: 7, kind: input, shape index: {}]
  %s8 = inlined_call_operand.vmem [shape: f32[1,128], index: 8, kind: input, shape index: {}]
  %s9 = inlined_call_operand.hbm [shape: f32[128,128], index: 9, kind: input, shape index: {}]
  %s10 = inlined_call_operand.vmem [shape: f32[1,128], index: 10, kind: input, shape index: {}]
  %s11 = inlined_call_operand.hbm [shape: f32[128,128], index: 11, kind: input, shape index: {}]
  %s12 = inlined_call_operand.vmem [shape: f32[1,128], index: 12, kind: input, shape index: {}]
  %s13 = inlined_call_operand.hbm [shape: f32[128,128], index: 13, kind: input, shape index: {}]
  %s14 = inlined_call_operand.vmem [shape: f32[1,128], index: 14, kind: input, shape index: {}]
  %s15 = inlined_call_operand.hbm [shape: f32[8,128], index: 15, kind: output, shape index: {}]
  %s16 = sld [smem:[#allocation0]]
  $region102: #{tpu_custom_call.1} parent=0
    _
  %s18 = ssub.s32 1, %s16
  %s19 = scalar_select 0, %s18, %s16
  $region1: #{tpu_custom_call.1} parent=0
    #allocation2 [shape = 'u8[4096]{0}', space=vmem, size = 0x1000, scoped, tag = 'input window, operand 0, single buffered']
    #allocation3 [shape = 's32[1]{0}', space=sflag, size = 0x4, scoped, tag = 'scoped memory for tpu_custom_call.1']
    #allocation4 [shape = 's32[1]{0}', space=sflag, size = 0x4, scoped, tag = 'scoped memory for tpu_custom_call.1']
    #allocation5 [shape = 'u8[40960]{0}', space=vmem, size = 0xa000, scoped, tag = 'input window, operand 1, single buffered']
    #allocation6 [shape = 's32[1]{0}', space=sflag, size = 0x4, scoped, tag = 'scoped memory for tpu_custom_call.1']
    #allocation7 [shape = 'u8[40960]{0}', space=vmem, size = 0xa000, scoped, tag = 'input window, operand 3, single buffered']
    #allocation8 [shape = 'u8[163840]{0}', space=vmem, size = 0x28000, scoped, tag = 'input window, operand 5, single buffered']
    #allocation9 [shape = 's32[1]{0}', space=sflag, size = 0x4, scoped, tag = 'scoped memory for tpu_custom_call.1']
    #allocation10 [shape = 'u8[65536]{0}', space=vmem, size = 0x10000, scoped, tag = 'input window, operand 7, single buffered']
    #allocation11 [shape = 'u8[65536]{0}', space=vmem, size = 0x10000, scoped, tag = 'input window, operand 9, single buffered']
    #allocation12 [shape = 's32[1]{0}', space=sflag, size = 0x4, scoped, tag = 'scoped memory for tpu_custom_call.1']
    #allocation13 [shape = 'u8[65536]{0}', space=vmem, size = 0x10000, scoped, tag = 'input window, operand 11, single buffered']
    #allocation14 [shape = 'u8[65536]{0}', space=vmem, size = 0x10000, scoped, tag = 'input window, operand 13, single buffered']
    #allocation15 [shape = 's32[1]{0}', space=sflag, size = 0x4, scoped, tag = 'scoped memory for tpu_custom_call.1']
    #allocation16 [shape = 'u8[4096]{0}', space=vmem, size = 0x1000, scoped, tag = 'output window, operand 0, single buffered']
    %20 = vsyncpa [#allocation3], 0
    %21 = vsyncpa [#allocation6], 0
    %22 = vsyncpa [#allocation9], 0
    %23 = vsyncpa [#allocation12], 0
    %24 = vsyncpa [#allocation15], 0
    %25 = vsyncpa [#allocation4], 0
    // Predicated region
    $region2: #{tpu_custom_call.1} parent=1 // pred_check
      _
    $region3: #{tpu_custom_call.1} parent=1 // pred_check_branch
      %27 = sbr.rel (0) target = $region5
    $region4: #{tpu_custom_call.1} parent=1 // pred_region
      %s29 = ssub.s32 128, 128
      %30 = vsyncadd [#allocation3], %s29
      %s32 = sshll.u32 [#allocation2], 4
      %s33 = int_to_ptr.vmem [resolvable:$true] %s32
      %35 = dma.hbm_to_vmem [thread:$0]  %s0, 128, %s33, [#allocation3]
    $region5: #{tpu_custom_call.1} parent=1 // pred_fallthru
      _
    // Predicated region
    $region6: #{tpu_custom_call.1} parent=1 // pred_check
      _
    $region7: #{tpu_custom_call.1} parent=1 // pred_check_branch
      %37 = sbr.rel (0) target = $region9
    $region8: #{tpu_custom_call.1} parent=1 // pred_region
      %s39 = ssub.s32 1280, 1280
      %40 = vsyncadd [#allocation6], %s39
      %s41 = sshll.u32 [#allocation5], 4
      %s42 = int_to_ptr.vmem [resolvable:$true] %s41
      %47 = dma.hbm_to_vmem [thread:$0]  %s1, 1280, %s42, [#allocation6], 256, 256, 16
    $region9: #{tpu_custom_call.1} parent=1 // pred_fallthru
      _
    // Predicated region
    $region10: #{tpu_custom_call.1} parent=1 // pred_check
      _
    $region11: #{tpu_custom_call.1} parent=1 // pred_check_branch
      %49 = sbr.rel (0) target = $region13
    $region12: #{tpu_custom_call.1} parent=1 // pred_region
      _
    $region13: #{tpu_custom_call.1} parent=1 // pred_fallthru
      _
    // Predicated region
    $region14: #{tpu_custom_call.1} parent=1 // pred_check
      _
    $region15: #{tpu_custom_call.1} parent=1 // pred_check_branch
      %51 = sbr.rel (0) target = $region17
    $region16: #{tpu_custom_call.1} parent=1 // pred_region
      %s53 = ssub.s32 1280, 1280
      %54 = vsyncadd [#allocation6], %s53
      %s55 = sshll.u32 [#allocation7], 4
      %s56 = int_to_ptr.vmem [resolvable:$true] %s55
      %61 = dma.hbm_to_vmem [thread:$0]  %s3, 1280, %s56, [#allocation6], 256, 256, 16
    $region17: #{tpu_custom_call.1} parent=1 // pred_fallthru
      _
    // Predicated region
    $region18: #{tpu_custom_call.1} parent=1 // pred_check
      _
    $region19: #{tpu_custom_call.1} parent=1 // pred_check_branch
      %63 = sbr.rel (0) target = $region21
    $region20: #{tpu_custom_call.1} parent=1 // pred_region
      _
    $region21: #{tpu_custom_call.1} parent=1 // pred_fallthru
      _
    // Predicated region
    $region22: #{tpu_custom_call.1} parent=1 // pred_check
      _
    $region23: #{tpu_custom_call.1} parent=1 // pred_check_branch
      %65 = sbr.rel (0) target = $region25
    $region24: #{tpu_custom_call.1} parent=1 // pred_region
      %s67 = ssub.s32 5120, 5120
      %68 = vsyncadd [#allocation9], %s67
      %s69 = sshll.u32 [#allocation8], 4
      %s70 = int_to_ptr.vmem [resolvable:$true] %s69
      %75 = dma.hbm_to_vmem [thread:$0]  %s5, 5120, %s70, [#allocation9], 256, 256, 16
    $region25: #{tpu_custom_call.1} parent=1 // pred_fallthru
      _
    // Predicated region
    $region26: #{tpu_custom_call.1} parent=1 // pred_check
      _
    $region27: #{tpu_custom_call.1} parent=1 // pred_check_branch
      %77 = sbr.rel (0) target = $region29
    $region28: #{tpu_custom_call.1} parent=1 // pred_region
      _
    $region29: #{tpu_custom_call.1} parent=1 // pred_fallthru
      _
    // Predicated region
    $region30: #{tpu_custom_call.1} parent=1 // pred_check
      _
    $region31: #{tpu_custom_call.1} parent=1 // pred_check_branch
      %79 = sbr.rel (0) target = $region33
    $region32: #{tpu_custom_call.1} parent=1 // pred_region
      %s81 = ssub.s32 2048, 2048
      %82 = vsyncadd [#allocation9], %s81
      %s83 = sshll.u32 [#allocation10], 4
      %s84 = int_to_ptr.vmem [resolvable:$true] %s83
      %89 = dma.hbm_to_vmem [thread:$0]  %s7, 2048, %s84, [#allocation9], 128, 128, 8
    $region33: #{tpu_custom_call.1} parent=1 // pred_fallthru
      _
    // Predicated region
    $region34: #{tpu_custom_call.1} parent=1 // pred_check
      _
    $region35: #{tpu_custom_call.1} parent=1 // pred_check_branch
      %91 = sbr.rel (0) target = $region37
    $region36: #{tpu_custom_call.1} parent=1 // pred_region
      _
    $region37: #{tpu_custom_call.1} parent=1 // pred_fallthru
      _
    // Predicated region
    $region38: #{tpu_custom_call.1} parent=1 // pred_check
      _
    $region39: #{tpu_custom_call.1} parent=1 // pred_check_branch
      %93 = sbr.rel (0) target = $region41
    $region40: #{tpu_custom_call.1} parent=1 // pred_region
      %s95 = ssub.s32 2048, 2048
      %96 = vsyncadd [#allocation12], %s95
      %s97 = sshll.u32 [#allocation11], 4
      %s98 = int_to_ptr.vmem [resolvable:$true] %s97
      %103 = dma.hbm_to_vmem [thread:$0]  %s9, 2048, %s98, [#allocation12], 128, 128, 8
    $region41: #{tpu_custom_call.1} parent=1 // pred_fallthru
      _
    // Predicated region
    $region42: #{tpu_custom_call.1} parent=1 // pred_check
      _
    $region43: #{tpu_custom_call.1} parent=1 // pred_check_branch
      %105 = sbr.rel (0) target = $region45
    $region44: #{tpu_custom_call.1} parent=1 // pred_region
      _
    $region45: #{tpu_custom_call.1} parent=1 // pred_fallthru
      _
    // Predicated region
    $region46: #{tpu_custom_call.1} parent=1 // pred_check
      _
    $region47: #{tpu_custom_call.1} parent=1 // pred_check_branch
      %107 = sbr.rel (0) target = $region49
    $region48: #{tpu_custom_call.1} parent=1 // pred_region
      %s109 = ssub.s32 2048, 2048
      %110 = vsyncadd [#allocation12], %s109
      %s111 = sshll.u32 [#allocation13], 4
      %s112 = int_to_ptr.vmem [resolvable:$true] %s111
      %117 = dma.hbm_to_vmem [thread:$0]  %s11, 2048, %s112, [#allocation12], 128, 128, 8
    $region49: #{tpu_custom_call.1} parent=1 // pred_fallthru
      _
    // Predicated region
    $region50: #{tpu_custom_call.1} parent=1 // pred_check
      _
    $region51: #{tpu_custom_call.1} parent=1 // pred_check_branch
      %119 = sbr.rel (0) target = $region53
    $region52: #{tpu_custom_call.1} parent=1 // pred_region
      _
    $region53: #{tpu_custom_call.1} parent=1 // pred_fallthru
      _
    // Predicated region
    $region54: #{tpu_custom_call.1} parent=1 // pred_check
      _
    $region55: #{tpu_custom_call.1} parent=1 // pred_check_branch
      %121 = sbr.rel (0) target = $region57
    $region56: #{tpu_custom_call.1} parent=1 // pred_region
      %s123 = ssub.s32 2048, 2048
      %124 = vsyncadd [#allocation15], %s123
      %s125 = sshll.u32 [#allocation14], 4
      %s126 = int_to_ptr.vmem [resolvable:$true] %s125
      %131 = dma.hbm_to_vmem [thread:$0]  %s13, 2048, %s126, [#allocation15], 128, 128, 8
    $region57: #{tpu_custom_call.1} parent=1 // pred_fallthru
      _
    // Predicated region
    $region58: #{tpu_custom_call.1} parent=1 // pred_check
      _
    $region59: #{tpu_custom_call.1} parent=1 // pred_check_branch
      %133 = sbr.rel (0) target = $region61
    $region60: #{tpu_custom_call.1} parent=1 // pred_region
      _
    $region61: #{tpu_custom_call.1} parent=1 // pred_fallthru
      _
    // Predicated region
    $region62: #{tpu_custom_call.1} parent=1 // pred_check
      _
    $region63: #{tpu_custom_call.1} parent=1 // pred_check_branch
      %135 = sbr.rel (0) target = $region65
    $region64: #{tpu_custom_call.1} parent=1 // pred_region
      %136 = dma.done [#allocation3], 128
    $region65: #{tpu_custom_call.1} parent=1 // pred_fallthru
      _
    // Predicated region
    $region66: #{tpu_custom_call.1} parent=1 // pred_check
      _
    $region67: #{tpu_custom_call.1} parent=1 // pred_check_branch
      %138 = sbr.rel (0) target = $region69
    $region68: #{tpu_custom_call.1} parent=1 // pred_region
      %139 = dma.done [#allocation6], 1280
    $region69: #{tpu_custom_call.1} parent=1 // pred_fallthru
      _
    // Predicated region
    $region70: #{tpu_custom_call.1} parent=1 // pred_check
      _
    $region71: #{tpu_custom_call.1} parent=1 // pred_check_branch
      %141 = sbr.rel (0) target = $region73
    $region72: #{tpu_custom_call.1} parent=1 // pred_region
      %142 = dma.done [#allocation6], 1280
    $region73: #{tpu_custom_call.1} parent=1 // pred_fallthru
      _
    // Predicated region
    $region74: #{tpu_custom_call.1} parent=1 // pred_check
      _
    $region75: #{tpu_custom_call.1} parent=1 // pred_check_branch
      %144 = sbr.rel (0) target = $region77
    $region76: #{tpu_custom_call.1} parent=1 // pred_region
      %145 = dma.done [#allocation9], 5120
    $region77: #{tpu_custom_call.1} parent=1 // pred_fallthru
      _
    // Predicated region
    $region78: #{tpu_custom_call.1} parent=1 // pred_check
      _
    $region79: #{tpu_custom_call.1} parent=1 // pred_check_branch
      %147 = sbr.rel (0) target = $region81
    $region80: #{tpu_custom_call.1} parent=1 // pred_region
      %148 = dma.done [#allocation9], 2048
    $region81: #{tpu_custom_call.1} parent=1 // pred_fallthru
      _
    // Predicated region
    $region82: #{tpu_custom_call.1} parent=1 // pred_check
      _
    $region83: #{tpu_custom_call.1} parent=1 // pred_check_branch
      %150 = sbr.rel (0) target = $region85
    $region84: #{tpu_custom_call.1} parent=1 // pred_region
      %151 = dma.done [#allocation12], 2048
    $region85: #{tpu_custom_call.1} parent=1 // pred_fallthru
      _
    // Predicated region
    $region86: #{tpu_custom_call.1} parent=1 // pred_check
      _
    $region87: #{tpu_custom_call.1} parent=1 // pred_check_branch
      %153 = sbr.rel (0) target = $region89
    $region88: #{tpu_custom_call.1} parent=1 // pred_region
      %154 = dma.done [#allocation12], 2048
    $region89: #{tpu_custom_call.1} parent=1 // pred_fallthru
      _
    // Predicated region
    $region90: #{tpu_custom_call.1} parent=1 // pred_check
      _
    $region91: #{tpu_custom_call.1} parent=1 // pred_check_branch
      %156 = sbr.rel (0) target = $region93
    $region92: #{tpu_custom_call.1} parent=1 // pred_region
      %157 = dma.done [#allocation15], 2048
    $region93: #{tpu_custom_call.1} parent=1 // pred_fallthru
      _
    %v158 = vld [vmem:[#allocation2] sm:$0xff]
    %v159 = vld [vmem:[#allocation5] sm:$0xff]
    %v160 = vld [vmem:[#allocation5 + $0x8] sm:$0xff]
    %v161 = vld [vmem:[#allocation5 + $0x10] sm:$0xff]
    %v162 = vld [vmem:[#allocation5 + $0x18] sm:$0xff]
    %v163 = vld [vmem:[#allocation5 + $0x20] sm:$0xff]
    %v164 = vld [vmem:[#allocation5 + $0x28] sm:$0xff]
    %v165 = vld [vmem:[#allocation5 + $0x30] sm:$0xff]
    %v166 = vld [vmem:[#allocation5 + $0x38] sm:$0xff]
    %v167 = vld [vmem:[#allocation5 + $0x40] sm:$0xff]
    %v168 = vld [vmem:[#allocation5 + $0x48] sm:$0xff]
    %v169 = vld [vmem:[%s2] sm:$0x3]
    %v171 = vlaneseq
    %v172 = vshrl.u32 %v171, 7
    %v173 = vsub.s32 0, %v172
    %v174 = vrot.slane %v169, %v173
    %v175 = vlaneseq
    %v176 = vshrl.u32 %v175, 7
    %v177 = vsub.s32 1, %v176
    %v178 = vrot.slane %v169, %v177
    %vm181 = vcmask 326656
    %v183 = vsel %vm181, %v158, 0
    %185 = vmatprep.subr.mxu0 0.0
    %186 = vmatpush1.msra.mxu0 0.0
    %187 = vmatprep.subr.mxu0 0.0
    %188 = vmatpush1.msra.mxu0 0.0
    %189 = vmatprep.subr.mxu0 0.0
    %190 = vmatpush1.msra.mxu0 0.0
    %191 = vmatprep.subr.mxu0 0.0
    %192 = vmatpush1.msra.mxu0 0.0
    %193 = vmatprep.subr.mxu0 0.0
    %194 = vmatpush1.msra.mxu0 0.0
    %195 = vmatprep.subr.mxu0 0.0
    %196 = vmatpush1.msra.mxu0 0.0
    %197 = vmatprep.subr.mxu0 0.0
    %198 = vmatpush1.msra.mxu0 0.0
    %199 = vmatprep.subr.mxu0 0.0
    %200 = vmatpush1.msra.mxu0 0.0
    %201 = vmatprep.subr.mxu0 0.0
    %202 = vmatpush1.msra.mxu0 0.0
    %203 = vmatprep.subr.mxu0 0.0
    %204 = vmatpush1.msra.mxu0 0.0
    %205 = vmatprep.subr.mxu0 0.0
    %206 = vmatpush1.msra.mxu0 0.0
    %207 = vmatprep.subr.mxu0 %v168
    %208 = vmatpush1.msra.mxu0 %v167
    %209 = vmatprep.subr.mxu0 %v166
    %210 = vmatpush1.msra.mxu0 %v165
    %211 = vmatprep.subr.mxu0 %v164
    %212 = vmatpush1.msra.mxu0 %v163
    %213 = vmatprep.subr.mxu0 %v162
    %214 = vmatpush1.msra.mxu0 %v161
    %215 = vmatprep.subr.mxu0 %v160
    %216 = vmatpush1.msra.mxu0 %v159
    %217 = vmatprep.subr.mxu0 0.0
    %218 = vmatpush2.msra.mxu0 0.0
    %219 = vmatprep.subr.mxu0 0.0
    %220 = vmatpush2.msra.mxu0 0.0
    %221 = vmatprep.subr.mxu0 0.0
    %222 = vmatpush2.msra.mxu0 0.0
    %223 = vmatprep.subr.mxu0 0.0
    %224 = vmatpush2.msra.mxu0 0.0
    %225 = vmatprep.subr.mxu0 0.0
    %226 = vmatpush2.msra.mxu0 0.0
    %227 = vmatprep.subr.mxu0 0.0
    %228 = vmatpush2.msra.mxu0 0.0
    %229 = vmatprep.subr.mxu0 0.0
    %230 = vmatpush2.msra.mxu0 0.0
    %231 = vmatprep.subr.mxu0 0.0
    %232 = vmatpush2.msra.mxu0 0.0
    %233 = vmatprep.subr.mxu0 0.0
    %234 = vmatpush2.msra.mxu0 0.0
    %235 = vmatprep.subr.mxu0 0.0
    %236 = vmatpush2.msra.mxu0 0.0
    %237 = vmatprep.subr.mxu0 0.0
    %238 = vmatpush2.msra.mxu0 0.0
    %239 = vmatprep.subr.mxu0 0.0
    %240 = vmatpush2.msra.mxu0 0.0
    %241 = vmatprep.subr.mxu0 0.0
    %242 = vmatpush2.msra.mxu0 0.0
    %243 = vmatprep.subr.mxu0 0.0
    %244 = vmatpush2.msra.mxu0 0.0
    %245 = vmatprep.subr.mxu0 0.0
    %246 = vmatpush2.msra.mxu0 0.0
    %247 = vmatprep.subr.mxu0 0.0
    %248 = vmatpush2.msra.mxu0 0.0
    %249 = vmatprep.mubr.f32.mxu0 0.0
    %250 = vmatmul.mubr.f32.gmra.mxu0 %v183
    %v251 = vpop.f32.mrf.mxu0
    %v252 = vadd.f32 %v174, %v251
    %v253 = vpop.f32.mrf.mxu0
    %v254 = vadd.f32 %v178, %v253
    %255 = vdwg.mxu0
    %v256 = vmul.f32 %v252, 0.5
    %v257 = vmul.f32 %v254, 0.5
    %v258 = vtanh.pop %v256
    %v259 = vtanh.pop %v257
    %v260 = vadd.f32 %v258, 1.0
    %v261 = vadd.f32 %v259, 1.0
    %v262 = vmul.f32 %v256, %v260
    %v263 = vmul.f32 %v257, %v261
    %v264 = vld [vmem:[#allocation7] sm:$0xff]
    %v265 = vld [vmem:[#allocation7 + $0x8] sm:$0xff]
    %v266 = vld [vmem:[#allocation7 + $0x10] sm:$0xff]
    %v267 = vld [vmem:[#allocation7 + $0x18] sm:$0xff]
    %v268 = vld [vmem:[#allocation7 + $0x20] sm:$0xff]
    %v269 = vld [vmem:[#allocation7 + $0x28] sm:$0xff]
    %v270 = vld [vmem:[#allocation7 + $0x30] sm:$0xff]
    %v271 = vld [vmem:[#allocation7 + $0x38] sm:$0xff]
    %v272 = vld [vmem:[#allocation7 + $0x40] sm:$0xff]
    %v273 = vld [vmem:[#allocation7 + $0x48] sm:$0xff]
    %v274 = vld [vmem:[%s4] sm:$0x3]
    %v276 = vlaneseq
    %v277 = vshrl.u32 %v276, 7
    %v278 = vsub.s32 0, %v277
    %v279 = vrot.slane %v274, %v278
    %v280 = vlaneseq
    %v281 = vshrl.u32 %v280, 7
    %v282 = vsub.s32 1, %v281
    %v283 = vrot.slane %v274, %v282
    %286 = vmatprep.subr.mxu0 0.0
    %287 = vmatpush1.msra.mxu0 0.0
    %288 = vmatprep.subr.mxu0 0.0
    %289 = vmatpush1.msra.mxu0 0.0
    %290 = vmatprep.subr.mxu0 0.0
    %291 = vmatpush1.msra.mxu0 0.0
    %292 = vmatprep.subr.mxu0 0.0
    %293 = vmatpush1.msra.mxu0 0.0
    %294 = vmatprep.subr.mxu0 0.0
    %295 = vmatpush1.msra.mxu0 0.0
    %296 = vmatprep.subr.mxu0 0.0
    %297 = vmatpush1.msra.mxu0 0.0
    %298 = vmatprep.subr.mxu0 0.0
    %299 = vmatpush1.msra.mxu0 0.0
    %300 = vmatprep.subr.mxu0 0.0
    %301 = vmatpush1.msra.mxu0 0.0
    %302 = vmatprep.subr.mxu0 0.0
    %303 = vmatpush1.msra.mxu0 0.0
    %304 = vmatprep.subr.mxu0 0.0
    %305 = vmatpush1.msra.mxu0 0.0
    %306 = vmatprep.subr.mxu0 0.0
    %307 = vmatpush1.msra.mxu0 0.0
    %308 = vmatprep.subr.mxu0 %v273
    %309 = vmatpush1.msra.mxu0 %v272
    %310 = vmatprep.subr.mxu0 %v271
    %311 = vmatpush1.msra.mxu0 %v270
    %312 = vmatprep.subr.mxu0 %v269
    %313 = vmatpush1.msra.mxu0 %v268
    %314 = vmatprep.subr.mxu0 %v267
    %315 = vmatpush1.msra.mxu0 %v266
    %316 = vmatprep.subr.mxu0 %v265
    %317 = vmatpush1.msra.mxu0 %v264
    %318 = vmatprep.subr.mxu0 0.0
    %319 = vmatpush2.msra.mxu0 0.0
    %320 = vmatprep.subr.mxu0 0.0
    %321 = vmatpush2.msra.mxu0 0.0
    %322 = vmatprep.subr.mxu0 0.0
    %323 = vmatpush2.msra.mxu0 0.0
    %324 = vmatprep.subr.mxu0 0.0
    %325 = vmatpush2.msra.mxu0 0.0
    %326 = vmatprep.subr.mxu0 0.0
    %327 = vmatpush2.msra.mxu0 0.0
    %328 = vmatprep.subr.mxu0 0.0
    %329 = vmatpush2.msra.mxu0 0.0
    %330 = vmatprep.subr.mxu0 0.0
    %331 = vmatpush2.msra.mxu0 0.0
    %332 = vmatprep.subr.mxu0 0.0
    %333 = vmatpush2.msra.mxu0 0.0
    %334 = vmatprep.subr.mxu0 0.0
    %335 = vmatpush2.msra.mxu0 0.0
    %336 = vmatprep.subr.mxu0 0.0
    %337 = vmatpush2.msra.mxu0 0.0
    %338 = vmatprep.subr.mxu0 0.0
    %339 = vmatpush2.msra.mxu0 0.0
    %340 = vmatprep.subr.mxu0 0.0
    %341 = vmatpush2.msra.mxu0 0.0
    %342 = vmatprep.subr.mxu0 0.0
    %343 = vmatpush2.msra.mxu0 0.0
    %344 = vmatprep.subr.mxu0 0.0
    %345 = vmatpush2.msra.mxu0 0.0
    %346 = vmatprep.subr.mxu0 0.0
    %347 = vmatpush2.msra.mxu0 0.0
    %348 = vmatprep.subr.mxu0 0.0
    %349 = vmatpush2.msra.mxu0 0.0
    %350 = vmatprep.mubr.f32.mxu0 0.0
    %351 = vmatmul.mubr.f32.gmra.mxu0 %v183
    %v352 = vpop.f32.mrf.mxu0
    %v353 = vadd.f32 %v279, %v352
    %v354 = vpop.f32.mrf.mxu0
    %v355 = vadd.f32 %v283, %v354
    %356 = vdwg.mxu0
    %v357 = vmul.f32 %v353, 0.5
    %v358 = vmul.f32 %v355, 0.5
    %v359 = vtanh.pop %v357
    %v360 = vtanh.pop %v358
    %v361 = vadd.f32 %v359, 1.0
    %v362 = vadd.f32 %v360, 1.0
    %v363 = vmul.f32 %v357, %v361
    %v364 = vmul.f32 %v358, %v362
    %v365 = vmax.f32 %v262, %v363
    %v366 = vmax.f32 %v263, %v364
    %v367 = vld [vmem:[#allocation8] sm:$0xff]
    %v368 = vld [vmem:[#allocation8 + $0x8] sm:$0xff]
    %v369 = vld [vmem:[#allocation8 + $0x10] sm:$0xff]
    %v370 = vld [vmem:[#allocation8 + $0x18] sm:$0xff]
    %v371 = vld [vmem:[#allocation8 + $0x20] sm:$0xff]
    %v372 = vld [vmem:[#allocation8 + $0x28] sm:$0xff]
    %v373 = vld [vmem:[#allocation8 + $0x30] sm:$0xff]
    %v374 = vld [vmem:[#allocation8 + $0x38] sm:$0xff]
    %v375 = vld [vmem:[#allocation8 + $0x40] sm:$0xff]
    %v376 = vld [vmem:[#allocation8 + $0x48] sm:$0xff]
    %v377 = vld [vmem:[#allocation8 + $0x50] sm:$0xff]
    %v378 = vld [vmem:[#allocation8 + $0x58] sm:$0xff]
    %v379 = vld [vmem:[#allocation8 + $0x60] sm:$0xff]
    %v380 = vld [vmem:[#allocation8 + $0x68] sm:$0xff]
    %v381 = vld [vmem:[#allocation8 + $0x70] sm:$0xff]
    %v382 = vld [vmem:[#allocation8 + $0x78] sm:$0xff]
    %v383 = vld [vmem:[#allocation8 + $0x80] sm:$0xff]
    %v384 = vld [vmem:[#allocation8 + $0x88] sm:$0xff]
    %v385 = vld [vmem:[#allocation8 + $0x90] sm:$0xff]
    %v386 = vld [vmem:[#allocation8 + $0x98] sm:$0xff]
    %v387 = vld [vmem:[#allocation8 + $0xa0] sm:$0xff]
    %v388 = vld [vmem:[#allocation8 + $0xa8] sm:$0xff]
    %v389 = vld [vmem:[#allocation8 + $0xb0] sm:$0xff]
    %v390 = vld [vmem:[#allocation8 + $0xb8] sm:$0xff]
    %v391 = vld [vmem:[#allocation8 + $0xc0] sm:$0xff]
    %v392 = vld [vmem:[#allocation8 + $0xc8] sm:$0xff]
    %v393 = vld [vmem:[#allocation8 + $0xd0] sm:$0xff]
    %v394 = vld [vmem:[#allocation8 + $0xd8] sm:$0xff]
    %v395 = vld [vmem:[#allocation8 + $0xe0] sm:$0xff]
    %v396 = vld [vmem:[#allocation8 + $0xe8] sm:$0xff]
    %v397 = vld [vmem:[#allocation8 + $0xf0] sm:$0xff]
    %v398 = vld [vmem:[#allocation8 + $0xf8] sm:$0xff]
    %v399 = vld [vmem:[#allocation8 + $0x100] sm:$0xff]
    %v400 = vld [vmem:[#allocation8 + $0x108] sm:$0xff]
    %v401 = vld [vmem:[#allocation8 + $0x110] sm:$0xff]
    %v402 = vld [vmem:[#allocation8 + $0x118] sm:$0xff]
    %v403 = vld [vmem:[#allocation8 + $0x120] sm:$0xff]
    %v404 = vld [vmem:[#allocation8 + $0x128] sm:$0xff]
    %v405 = vld [vmem:[#allocation8 + $0x130] sm:$0xff]
    %v406 = vld [vmem:[#allocation8 + $0x138] sm:$0xff]
    %v407 = vld [vmem:[%s6] sm:$0x3]
    %v409 = vlaneseq
    %v410 = vshrl.u32 %v409, 7
    %v411 = vsub.s32 0, %v410
    %v412 = vrot.slane %v407, %v411
    %v413 = vlaneseq
    %v414 = vshrl.u32 %v413, 7
    %v415 = vsub.s32 1, %v414
    %v416 = vrot.slane %v407, %v415
    %vm419 = vcmask 261120
    %v421 = vsel %vm419, %v366, 0
    %423 = vmatprep.subr.mxu0 %v398
    %424 = vmatpush1.msra.mxu0 %v397
    %425 = vmatprep.subr.mxu0 %v396
    %426 = vmatpush1.msra.mxu0 %v395
    %427 = vmatprep.subr.mxu0 %v394
    %428 = vmatpush1.msra.mxu0 %v393
    %429 = vmatprep.subr.mxu0 %v392
    %430 = vmatpush1.msra.mxu0 %v391
    %431 = vmatprep.subr.mxu0 %v390
    %432 = vmatpush1.msra.mxu0 %v389
    %433 = vmatprep.subr.mxu0 %v388
    %434 = vmatpush1.msra.mxu0 %v387
    %435 = vmatprep.subr.mxu0 %v386
    %436 = vmatpush1.msra.mxu0 %v385
    %437 = vmatprep.subr.mxu0 %v384
    %438 = vmatpush1.msra.mxu0 %v383
    %439 = vmatprep.subr.mxu0 %v382
    %440 = vmatpush1.msra.mxu0 %v381
    %441 = vmatprep.subr.mxu0 %v380
    %442 = vmatpush1.msra.mxu0 %v379
    %443 = vmatprep.subr.mxu0 %v378
    %444 = vmatpush1.msra.mxu0 %v377
    %445 = vmatprep.subr.mxu0 %v376
    %446 = vmatpush1.msra.mxu0 %v375
    %447 = vmatprep.subr.mxu0 %v374
    %448 = vmatpush1.msra.mxu0 %v373
    %449 = vmatprep.subr.mxu0 %v372
    %450 = vmatpush1.msra.mxu0 %v371
    %451 = vmatprep.subr.mxu0 %v370
    %452 = vmatpush1.msra.mxu0 %v369
    %453 = vmatprep.subr.mxu0 %v368
    %454 = vmatpush1.msra.mxu0 %v367
    %455 = vmatprep.subr.mxu0 0.0
    %456 = vmatpush2.msra.mxu0 0.0
    %457 = vmatprep.subr.mxu0 0.0
    %458 = vmatpush2.msra.mxu0 0.0
    %459 = vmatprep.subr.mxu0 0.0
    %460 = vmatpush2.msra.mxu0 0.0
    %461 = vmatprep.subr.mxu0 0.0
    %462 = vmatpush2.msra.mxu0 0.0
    %463 = vmatprep.subr.mxu0 0.0
    %464 = vmatpush2.msra.mxu0 0.0
    %465 = vmatprep.subr.mxu0 0.0
    %466 = vmatpush2.msra.mxu0 0.0
    %467 = vmatprep.subr.mxu0 0.0
    %468 = vmatpush2.msra.mxu0 0.0
    %469 = vmatprep.subr.mxu0 0.0
    %470 = vmatpush2.msra.mxu0 0.0
    %471 = vmatprep.subr.mxu0 0.0
    %472 = vmatpush2.msra.mxu0 0.0
    %473 = vmatprep.subr.mxu0 0.0
    %474 = vmatpush2.msra.mxu0 0.0
    %475 = vmatprep.subr.mxu0 0.0
    %476 = vmatpush2.msra.mxu0 0.0
    %477 = vmatprep.subr.mxu0 0.0
    %478 = vmatpush2.msra.mxu0 0.0
    %479 = vmatprep.subr.mxu0 %v406
    %480 = vmatpush2.msra.mxu0 %v405
    %481 = vmatprep.subr.mxu0 %v404
    %482 = vmatpush2.msra.mxu0 %v403
    %483 = vmatprep.subr.mxu0 %v402
    %484 = vmatpush2.msra.mxu0 %v401
    %485 = vmatprep.subr.mxu0 %v400
    %486 = vmatpush2.msra.mxu0 %v399
    %487 = vmatprep.mubr.f32.mxu0 %v421
    %488 = vmatmul.mubr.f32.gmra.mxu0 %v365
    %v489 = vpop.f32.mrf.mxu0
    %v490 = vadd.f32 %v412, %v489
    %v491 = vpop.f32.mrf.mxu0
    %v492 = vadd.f32 %v416, %v491
    %493 = vdwg.mxu0
    %v494 = vmul.f32 %v490, 0.5
    %v495 = vmul.f32 %v492, 0.5
    %v496 = vtanh.pop %v494
    %v497 = vtanh.pop %v495
    %v498 = vadd.f32 %v496, 1.0
    %v499 = vadd.f32 %v497, 1.0
    %v500 = vmul.f32 %v494, %v498
    %v501 = vmul.f32 %v495, %v499
    %v502 = vmax.f32 %v500, %v501
    %v503 = vld [vmem:[#allocation10] sm:$0xff]
    %v504 = vld [vmem:[#allocation10 + $0x8] sm:$0xff]
    %v505 = vld [vmem:[#allocation10 + $0x10] sm:$0xff]
    %v506 = vld [vmem:[#allocation10 + $0x18] sm:$0xff]
    %v507 = vld [vmem:[#allocation10 + $0x20] sm:$0xff]
    %v508 = vld [vmem:[#allocation10 + $0x28] sm:$0xff]
    %v509 = vld [vmem:[#allocation10 + $0x30] sm:$0xff]
    %v510 = vld [vmem:[#allocation10 + $0x38] sm:$0xff]
    %v511 = vld [vmem:[#allocation10 + $0x40] sm:$0xff]
    %v512 = vld [vmem:[#allocation10 + $0x48] sm:$0xff]
    %v513 = vld [vmem:[#allocation10 + $0x50] sm:$0xff]
    %v514 = vld [vmem:[#allocation10 + $0x58] sm:$0xff]
    %v515 = vld [vmem:[#allocation10 + $0x60] sm:$0xff]
    %v516 = vld [vmem:[#allocation10 + $0x68] sm:$0xff]
    %v517 = vld [vmem:[#allocation10 + $0x70] sm:$0xff]
    %v518 = vld [vmem:[#allocation10 + $0x78] sm:$0xff]
    %v519 = vld [vmem:[%s8] sm:$0x1]
    %v521 = vlaneseq
    %v522 = vshrl.u32 %v521, 7
    %v523 = vsub.s32 0, %v522
    %v524 = vrot.slane %v519, %v523
    %526 = vmatprep.subr.mxu0 0.0
    %527 = vmatpush1.msra.mxu0 %v518
    %528 = vmatprep.subr.mxu0 0.0
    %529 = vmatpush1.msra.mxu0 %v517
    %530 = vmatprep.subr.mxu0 0.0
    %531 = vmatpush1.msra.mxu0 %v516
    %532 = vmatprep.subr.mxu0 0.0
    %533 = vmatpush1.msra.mxu0 %v515
    %534 = vmatprep.subr.mxu0 0.0
    %535 = vmatpush1.msra.mxu0 %v514
    %536 = vmatprep.subr.mxu0 0.0
    %537 = vmatpush1.msra.mxu0 %v513
    %538 = vmatprep.subr.mxu0 0.0
    %539 = vmatpush1.msra.mxu0 %v512
    %540 = vmatprep.subr.mxu0 0.0
    %541 = vmatpush1.msra.mxu0 %v511
    %542 = vmatprep.subr.mxu0 0.0
    %543 = vmatpush1.msra.mxu0 %v510
    %544 = vmatprep.subr.mxu0 0.0
    %545 = vmatpush1.msra.mxu0 %v509
    %546 = vmatprep.subr.mxu0 0.0
    %547 = vmatpush1.msra.mxu0 %v508
    %548 = vmatprep.subr.mxu0 0.0
    %549 = vmatpush1.msra.mxu0 %v507
    %550 = vmatprep.subr.mxu0 0.0
    %551 = vmatpush1.msra.mxu0 %v506
    %552 = vmatprep.subr.mxu0 0.0
    %553 = vmatpush1.msra.mxu0 %v505
    %554 = vmatprep.subr.mxu0 0.0
    %555 = vmatpush1.msra.mxu0 %v504
    %556 = vmatprep.subr.mxu0 0.0
    %557 = vmatpush1.msra.mxu0 %v503
    %558 = vmatprep.subr.mxu0 0.0
    %559 = vmatpush2.msra.mxu0 0.0
    %560 = vmatprep.subr.mxu0 0.0
    %561 = vmatpush2.msra.mxu0 0.0
    %562 = vmatprep.subr.mxu0 0.0
    %563 = vmatpush2.msra.mxu0 0.0
    %564 = vmatprep.subr.mxu0 0.0
    %565 = vmatpush2.msra.mxu0 0.0
    %566 = vmatprep.subr.mxu0 0.0
    %567 = vmatpush2.msra.mxu0 0.0
    %568 = vmatprep.subr.mxu0 0.0
    %569 = vmatpush2.msra.mxu0 0.0
    %570 = vmatprep.subr.mxu0 0.0
    %571 = vmatpush2.msra.mxu0 0.0
    %572 = vmatprep.subr.mxu0 0.0
    %573 = vmatpush2.msra.mxu0 0.0
    %574 = vmatprep.subr.mxu0 0.0
    %575 = vmatpush2.msra.mxu0 0.0
    %576 = vmatprep.subr.mxu0 0.0
    %577 = vmatpush2.msra.mxu0 0.0
    %578 = vmatprep.subr.mxu0 0.0
    %579 = vmatpush2.msra.mxu0 0.0
    %580 = vmatprep.subr.mxu0 0.0
    %581 = vmatpush2.msra.mxu0 0.0
    %582 = vmatprep.subr.mxu0 0.0
    %583 = vmatpush2.msra.mxu0 0.0
    %584 = vmatprep.subr.mxu0 0.0
    %585 = vmatpush2.msra.mxu0 0.0
    %586 = vmatprep.subr.mxu0 0.0
    %587 = vmatpush2.msra.mxu0 0.0
    %588 = vmatprep.subr.mxu0 0.0
    %589 = vmatpush2.msra.mxu0 0.0
    %590 = vmatprep.mubr.f32.mxu0 0.0
    %591 = vmatmul.mubr.f32.gmra.mxu0 %v502
    %v592 = vpop.f32.mrf.mxu0
    %v593 = vadd.f32 %v524, %v592
    %v594 = vpop.f32.mrf.mxu0
    %595 = vdwg.mxu0
    %v596 = vmul.f32 %v593, 0.5
    %v597 = vtanh.pop %v596
    %v598 = vadd.f32 %v597, 1.0
    %v599 = vmul.f32 %v596, %v598
    %v600 = vld [vmem:[#allocation11] sm:$0xff]
    %v601 = vld [vmem:[#allocation11 + $0x8] sm:$0xff]
    %v602 = vld [vmem:[#allocation11 + $0x10] sm:$0xff]
    %v603 = vld [vmem:[#allocation11 + $0x18] sm:$0xff]
    %v604 = vld [vmem:[#allocation11 + $0x20] sm:$0xff]
    %v605 = vld [vmem:[#allocation11 + $0x28] sm:$0xff]
    %v606 = vld [vmem:[#allocation11 + $0x30] sm:$0xff]
    %v607 = vld [vmem:[#allocation11 + $0x38] sm:$0xff]
    %v608 = vld [vmem:[#allocation11 + $0x40] sm:$0xff]
    %v609 = vld [vmem:[#allocation11 + $0x48] sm:$0xff]
    %v610 = vld [vmem:[#allocation11 + $0x50] sm:$0xff]
    %v611 = vld [vmem:[#allocation11 + $0x58] sm:$0xff]
    %v612 = vld [vmem:[#allocation11 + $0x60] sm:$0xff]
    %v613 = vld [vmem:[#allocation11 + $0x68] sm:$0xff]
    %v614 = vld [vmem:[#allocation11 + $0x70] sm:$0xff]
    %v615 = vld [vmem:[#allocation11 + $0x78] sm:$0xff]
    %v616 = vld [vmem:[%s10] sm:$0x1]
    %v618 = vlaneseq
    %v619 = vshrl.u32 %v618, 7
    %v620 = vsub.s32 0, %v619
    %v621 = vrot.slane %v616, %v620
    %623 = vmatprep.subr.mxu0 0.0
    %624 = vmatpush1.msra.mxu0 %v615
    %625 = vmatprep.subr.mxu0 0.0
    %626 = vmatpush1.msra.mxu0 %v614
    %627 = vmatprep.subr.mxu0 0.0
    %628 = vmatpush1.msra.mxu0 %v613
    %629 = vmatprep.subr.mxu0 0.0
    %630 = vmatpush1.msra.mxu0 %v612
    %631 = vmatprep.subr.mxu0 0.0
    %632 = vmatpush1.msra.mxu0 %v611
    %633 = vmatprep.subr.mxu0 0.0
    %634 = vmatpush1.msra.mxu0 %v610
    %635 = vmatprep.subr.mxu0 0.0
    %636 = vmatpush1.msra.mxu0 %v609
    %637 = vmatprep.subr.mxu0 0.0
    %638 = vmatpush1.msra.mxu0 %v608
    %639 = vmatprep.subr.mxu0 0.0
    %640 = vmatpush1.msra.mxu0 %v607
    %641 = vmatprep.subr.mxu0 0.0
    %642 = vmatpush1.msra.mxu0 %v606
    %643 = vmatprep.subr.mxu0 0.0
    %644 = vmatpush1.msra.mxu0 %v605
    %645 = vmatprep.subr.mxu0 0.0
    %646 = vmatpush1.msra.mxu0 %v604
    %647 = vmatprep.subr.mxu0 0.0
    %648 = vmatpush1.msra.mxu0 %v603
    %649 = vmatprep.subr.mxu0 0.0
    %650 = vmatpush1.msra.mxu0 %v602
    %651 = vmatprep.subr.mxu0 0.0
    %652 = vmatpush1.msra.mxu0 %v601
    %653 = vmatprep.subr.mxu0 0.0
    %654 = vmatpush1.msra.mxu0 %v600
    %655 = vmatprep.subr.mxu0 0.0
    %656 = vmatpush2.msra.mxu0 0.0
    %657 = vmatprep.subr.mxu0 0.0
    %658 = vmatpush2.msra.mxu0 0.0
    %659 = vmatprep.subr.mxu0 0.0
    %660 = vmatpush2.msra.mxu0 0.0
    %661 = vmatprep.subr.mxu0 0.0
    %662 = vmatpush2.msra.mxu0 0.0
    %663 = vmatprep.subr.mxu0 0.0
    %664 = vmatpush2.msra.mxu0 0.0
    %665 = vmatprep.subr.mxu0 0.0
    %666 = vmatpush2.msra.mxu0 0.0
    %667 = vmatprep.subr.mxu0 0.0
    %668 = vmatpush2.msra.mxu0 0.0
    %669 = vmatprep.subr.mxu0 0.0
    %670 = vmatpush2.msra.mxu0 0.0
    %671 = vmatprep.subr.mxu0 0.0
    %672 = vmatpush2.msra.mxu0 0.0
    %673 = vmatprep.subr.mxu0 0.0
    %674 = vmatpush2.msra.mxu0 0.0
    %675 = vmatprep.subr.mxu0 0.0
    %676 = vmatpush2.msra.mxu0 0.0
    %677 = vmatprep.subr.mxu0 0.0
    %678 = vmatpush2.msra.mxu0 0.0
    %679 = vmatprep.subr.mxu0 0.0
    %680 = vmatpush2.msra.mxu0 0.0
    %681 = vmatprep.subr.mxu0 0.0
    %682 = vmatpush2.msra.mxu0 0.0
    %683 = vmatprep.subr.mxu0 0.0
    %684 = vmatpush2.msra.mxu0 0.0
    %685 = vmatprep.subr.mxu0 0.0
    %686 = vmatpush2.msra.mxu0 0.0
    %687 = vmatprep.mubr.f32.mxu0 0.0
    %688 = vmatmul.mubr.f32.gmra.mxu0 %v599
    %v689 = vpop.f32.mrf.mxu0
    %v690 = vadd.f32 %v621, %v689
    %v691 = vpop.f32.mrf.mxu0
    %692 = vdwg.mxu0
    %v693 = vld [vmem:[#allocation13] sm:$0xff]
    %v694 = vld [vmem:[#allocation13 + $0x8] sm:$0xff]
    %v695 = vld [vmem:[#allocation13 + $0x10] sm:$0xff]
    %v696 = vld [vmem:[#allocation13 + $0x18] sm:$0xff]
    %v697 = vld [vmem:[#allocation13 + $0x20] sm:$0xff]
    %v698 = vld [vmem:[#allocation13 + $0x28] sm:$0xff]
    %v699 = vld [vmem:[#allocation13 + $0x30] sm:$0xff]
    %v700 = vld [vmem:[#allocation13 + $0x38] sm:$0xff]
    %v701 = vld [vmem:[#allocation13 + $0x40] sm:$0xff]
    %v702 = vld [vmem:[#allocation13 + $0x48] sm:$0xff]
    %v703 = vld [vmem:[#allocation13 + $0x50] sm:$0xff]
    %v704 = vld [vmem:[#allocation13 + $0x58] sm:$0xff]
    %v705 = vld [vmem:[#allocation13 + $0x60] sm:$0xff]
    %v706 = vld [vmem:[#allocation13 + $0x68] sm:$0xff]
    %v707 = vld [vmem:[#allocation13 + $0x70] sm:$0xff]
    %v708 = vld [vmem:[#allocation13 + $0x78] sm:$0xff]
    %v709 = vld [vmem:[%s12] sm:$0x1]
    %v711 = vlaneseq
    %v712 = vshrl.u32 %v711, 7
    %v713 = vsub.s32 0, %v712
    %v714 = vrot.slane %v709, %v713
    %716 = vmatprep.subr.mxu0 0.0
    %717 = vmatpush1.msra.mxu0 %v708
    %718 = vmatprep.subr.mxu0 0.0
    %719 = vmatpush1.msra.mxu0 %v707
    %720 = vmatprep.subr.mxu0 0.0
    %721 = vmatpush1.msra.mxu0 %v706
    %722 = vmatprep.subr.mxu0 0.0
    %723 = vmatpush1.msra.mxu0 %v705
    %724 = vmatprep.subr.mxu0 0.0
    %725 = vmatpush1.msra.mxu0 %v704
    %726 = vmatprep.subr.mxu0 0.0
    %727 = vmatpush1.msra.mxu0 %v703
    %728 = vmatprep.subr.mxu0 0.0
    %729 = vmatpush1.msra.mxu0 %v702
    %730 = vmatprep.subr.mxu0 0.0
    %731 = vmatpush1.msra.mxu0 %v701
    %732 = vmatprep.subr.mxu0 0.0
    %733 = vmatpush1.msra.mxu0 %v700
    %734 = vmatprep.subr.mxu0 0.0
    %735 = vmatpush1.msra.mxu0 %v699
    %736 = vmatprep.subr.mxu0 0.0
    %737 = vmatpush1.msra.mxu0 %v698
    %738 = vmatprep.subr.mxu0 0.0
    %739 = vmatpush1.msra.mxu0 %v697
    %740 = vmatprep.subr.mxu0 0.0
    %741 = vmatpush1.msra.mxu0 %v696
    %742 = vmatprep.subr.mxu0 0.0
    %743 = vmatpush1.msra.mxu0 %v695
    %744 = vmatprep.subr.mxu0 0.0
    %745 = vmatpush1.msra.mxu0 %v694
    %746 = vmatprep.subr.mxu0 0.0
    %747 = vmatpush1.msra.mxu0 %v693
    %748 = vmatprep.subr.mxu0 0.0
    %749 = vmatpush2.msra.mxu0 0.0
    %750 = vmatprep.subr.mxu0 0.0
    %751 = vmatpush2.msra.mxu0 0.0
    %752 = vmatprep.subr.mxu0 0.0
    %753 = vmatpush2.msra.mxu0 0.0
    %754 = vmatprep.subr.mxu0 0.0
    %755 = vmatpush2.msra.mxu0 0.0
    %756 = vmatprep.subr.mxu0 0.0
    %757 = vmatpush2.msra.mxu0 0.0
    %758 = vmatprep.subr.mxu0 0.0
    %759 = vmatpush2.msra.mxu0 0.0
    %760 = vmatprep.subr.mxu0 0.0
    %761 = vmatpush2.msra.mxu0 0.0
    %762 = vmatprep.subr.mxu0 0.0
    %763 = vmatpush2.msra.mxu0 0.0
    %764 = vmatprep.subr.mxu0 0.0
    %765 = vmatpush2.msra.mxu0 0.0
    %766 = vmatprep.subr.mxu0 0.0
    %767 = vmatpush2.msra.mxu0 0.0
    %768 = vmatprep.subr.mxu0 0.0
    %769 = vmatpush2.msra.mxu0 0.0
    %770 = vmatprep.subr.mxu0 0.0
    %771 = vmatpush2.msra.mxu0 0.0
    %772 = vmatprep.subr.mxu0 0.0
    %773 = vmatpush2.msra.mxu0 0.0
    %774 = vmatprep.subr.mxu0 0.0
    %775 = vmatpush2.msra.mxu0 0.0
    %776 = vmatprep.subr.mxu0 0.0
    %777 = vmatpush2.msra.mxu0 0.0
    %778 = vmatprep.subr.mxu0 0.0
    %779 = vmatpush2.msra.mxu0 0.0
    %780 = vmatprep.mubr.f32.mxu0 0.0
    %781 = vmatmul.mubr.f32.gmra.mxu0 %v690
    %v782 = vpop.f32.mrf.mxu0
    %v783 = vadd.f32 %v714, %v782
    %v784 = vpop.f32.mrf.mxu0
    %785 = vdwg.mxu0
    %v786 = vmul.f32 %v783, 0.5
    %v787 = vtanh.pop %v786
    %v788 = vadd.f32 %v787, 1.0
    %v789 = vmul.f32 %v786, %v788
    %v790 = vld [vmem:[#allocation14] sm:$0xff]
    %v791 = vld [vmem:[#allocation14 + $0x8] sm:$0xff]
    %v792 = vld [vmem:[#allocation14 + $0x10] sm:$0xff]
    %v793 = vld [vmem:[#allocation14 + $0x18] sm:$0xff]
    %v794 = vld [vmem:[#allocation14 + $0x20] sm:$0xff]
    %v795 = vld [vmem:[#allocation14 + $0x28] sm:$0xff]
    %v796 = vld [vmem:[#allocation14 + $0x30] sm:$0xff]
    %v797 = vld [vmem:[#allocation14 + $0x38] sm:$0xff]
    %v798 = vld [vmem:[#allocation14 + $0x40] sm:$0xff]
    %v799 = vld [vmem:[#allocation14 + $0x48] sm:$0xff]
    %v800 = vld [vmem:[#allocation14 + $0x50] sm:$0xff]
    %v801 = vld [vmem:[#allocation14 + $0x58] sm:$0xff]
    %v802 = vld [vmem:[#allocation14 + $0x60] sm:$0xff]
    %v803 = vld [vmem:[#allocation14 + $0x68] sm:$0xff]
    %v804 = vld [vmem:[#allocation14 + $0x70] sm:$0xff]
    %v805 = vld [vmem:[#allocation14 + $0x78] sm:$0xff]
    %v806 = vld [vmem:[%s14] sm:$0x1]
    %v808 = vlaneseq
    %v809 = vshrl.u32 %v808, 7
    %v810 = vsub.s32 0, %v809
    %v811 = vrot.slane %v806, %v810
    %813 = vmatprep.subr.mxu0 0.0
    %814 = vmatpush1.msra.mxu0 %v805
    %815 = vmatprep.subr.mxu0 0.0
    %816 = vmatpush1.msra.mxu0 %v804
    %817 = vmatprep.subr.mxu0 0.0
    %818 = vmatpush1.msra.mxu0 %v803
    %819 = vmatprep.subr.mxu0 0.0
    %820 = vmatpush1.msra.mxu0 %v802
    %821 = vmatprep.subr.mxu0 0.0
    %822 = vmatpush1.msra.mxu0 %v801
    %823 = vmatprep.subr.mxu0 0.0
    %824 = vmatpush1.msra.mxu0 %v800
    %825 = vmatprep.subr.mxu0 0.0
    %826 = vmatpush1.msra.mxu0 %v799
    %827 = vmatprep.subr.mxu0 0.0
    %828 = vmatpush1.msra.mxu0 %v798
    %829 = vmatprep.subr.mxu0 0.0
    %830 = vmatpush1.msra.mxu0 %v797
    %831 = vmatprep.subr.mxu0 0.0
    %832 = vmatpush1.msra.mxu0 %v796
    %833 = vmatprep.subr.mxu0 0.0
    %834 = vmatpush1.msra.mxu0 %v795
    %835 = vmatprep.subr.mxu0 0.0
    %836 = vmatpush1.msra.mxu0 %v794
    %837 = vmatprep.subr.mxu0 0.0
    %838 = vmatpush1.msra.mxu0 %v793
    %839 = vmatprep.subr.mxu0 0.0
    %840 = vmatpush1.msra.mxu0 %v792
    %841 = vmatprep.subr.mxu0 0.0
    %842 = vmatpush1.msra.mxu0 %v791
    %843 = vmatprep.subr.mxu0 0.0
    %844 = vmatpush1.msra.mxu0 %v790
    %845 = vmatprep.subr.mxu0 0.0
    %846 = vmatpush2.msra.mxu0 0.0
    %847 = vmatprep.subr.mxu0 0.0
    %848 = vmatpush2.msra.mxu0 0.0
    %849 = vmatprep.subr.mxu0 0.0
    %850 = vmatpush2.msra.mxu0 0.0
    %851 = vmatprep.subr.mxu0 0.0
    %852 = vmatpush2.msra.mxu0 0.0
    %853 = vmatprep.subr.mxu0 0.0
    %854 = vmatpush2.msra.mxu0 0.0
    %855 = vmatprep.subr.mxu0 0.0
    %856 = vmatpush2.msra.mxu0 0.0
    %857 = vmatprep.subr.mxu0 0.0
    %858 = vmatpush2.msra.mxu0 0.0
    %859 = vmatprep.subr.mxu0 0.0
    %860 = vmatpush2.msra.mxu0 0.0
    %861 = vmatprep.subr.mxu0 0.0
    %862 = vmatpush2.msra.mxu0 0.0
    %863 = vmatprep.subr.mxu0 0.0
    %864 = vmatpush2.msra.mxu0 0.0
    %865 = vmatprep.subr.mxu0 0.0
    %866 = vmatpush2.msra.mxu0 0.0
    %867 = vmatprep.subr.mxu0 0.0
    %868 = vmatpush2.msra.mxu0 0.0
    %869 = vmatprep.subr.mxu0 0.0
    %870 = vmatpush2.msra.mxu0 0.0
    %871 = vmatprep.subr.mxu0 0.0
    %872 = vmatpush2.msra.mxu0 0.0
    %873 = vmatprep.subr.mxu0 0.0
    %874 = vmatpush2.msra.mxu0 0.0
    %875 = vmatprep.subr.mxu0 0.0
    %876 = vmatpush2.msra.mxu0 0.0
    %877 = vmatprep.mubr.f32.mxu0 0.0
    %878 = vmatmul.mubr.f32.gmra.mxu0 %v789
    %v879 = vpop.f32.mrf.mxu0
    %v880 = vadd.f32 %v811, %v879
    %v881 = vpop.f32.mrf.mxu0
    %882 = vdwg.mxu0
    %883 = vst [vmem:[#allocation16] sm:$0xff] %v880
    // Predicated region
    $region94: #{tpu_custom_call.1} parent=1 // pred_check
      _
    $region95: #{tpu_custom_call.1} parent=1 // pred_check_branch
      %885 = sbr.rel (0) target = $region97
    $region96: #{tpu_custom_call.1} parent=1 // pred_region
      %s887 = ssub.s32 128, 128
      %888 = vsyncadd [#allocation4], %s887
      %s890 = sshll.u32 [#allocation16], 4
      %s891 = int_to_ptr.vmem [resolvable:$true] %s890
      %893 = dma.vmem_to_hbm [thread:$0]  %s891, 128, %s15, [#allocation4]
    $region97: #{tpu_custom_call.1} parent=1 // pred_fallthru
      _
    // Predicated region
    $region98: #{tpu_custom_call.1} parent=1 // pred_check
      _
    $region99: #{tpu_custom_call.1} parent=1 // pred_check_branch
      %895 = sbr.rel (0) target = $region101
    $region100: #{tpu_custom_call.1} parent=1 // pred_region
      %896 = dma.done [#allocation4], 128
    $region101: #{tpu_custom_call.1} parent=1 // pred_fallthru
      _
    %897 = vsyncpa [#allocation3], 1
    %898 = vsyncpa [#allocation6], 1
    %899 = vsyncpa [#allocation9], 1
    %900 = vsyncpa [#allocation12], 1
    %901 = vsyncpa [#allocation15], 1
    %902 = vsyncpa [#allocation4], 1

</llo_original>
